<compile_context>
chip_gen: v5e
topology: v5e:2x2
jax: 0.10.0
libtpu: 0.0.40
codegen_flags: <defaults>
</compile_context>

<pallas_src>
import functools

import jax
import jax.numpy as jnp
from jax.experimental import pallas as pl
from jax.experimental.pallas import tpu as pltpu


def _round_up(v, m):
    return ((v + m - 1) // m) * m


def _triple(v):
    return (v, v, v) if isinstance(v, int) else tuple(v)


# ----------------------------- Pallas kernel ------------------------------- #

def _fused_conv3d_block_kernel(x_ref, w_ref, scale_ref, shift_ref, o_ref, acc_ref,
                               *, kd, act):
    """One (sample n, M-tile m, output-depth do, depth-tap a) step.

    x_ref     : (1, 1, tm, Kf)  bf16 folded input rows for depth plane do*sd + a
    w_ref     : (kd, Kf, Cp)    bf16 weights (resident; indexed by tap a), Cout padded to Cp
    scale_ref : (1, Cp)         f32 folded BN scale
    shift_ref : (1, Cp)         f32 folded BN shift + conv bias
    o_ref     : (1, 1, tm, Cp)  bf16 output tile
    acc_ref   : (tm, Cp)        f32 VMEM accumulator (resident across the kd tap loop)
    """
    a = pl.program_id(3)

    @pl.when(a == 0)
    def _():
        acc_ref[...] = jnp.zeros_like(acc_ref)

    # Single wide dot: K = kh*kw*Cin.
    acc_ref[...] += jnp.dot(x_ref[0, 0], w_ref[a],
                            preferred_element_type=jnp.float32)

    @pl.when(a == kd - 1)
    def _():
        y = acc_ref[...] * scale_ref[...] + shift_ref[...]   # folded BN + conv bias (f32)
        if act == "relu":
            y = jnp.maximum(y, 0.0)
        elif act == "sigmoid":
            y = jax.nn.sigmoid(y)
        elif act == "tanh":
            y = jnp.tanh(y)
        elif act == "none":
            pass
        else:
            raise NotImplementedError(act)
        o_ref[0, 0] = y.astype(o_ref.dtype)


# ------------------------------- wrapper ----------------------------------- #

def basic_block_3dconv(x_ncdhw, params, *, size, stride, padding, norm, act,
                       drop, bias, eps=1e-5, training=False):
    """Forward pass of BasicBlock_3DCONV.  x_ncdhw: (N, Cin, D, H, W)."""
    if training:
        # TODO(synk): training-mode BatchNorm (batch stats) and Dropout masking not implemented.
        raise NotImplementedError("eval-mode only (running-stat BN, identity dropout)")
    del drop  # eval-mode dropout is the identity

    ksize, kstride, kpad = _triple(size), _triple(stride), _triple(padding)
    kd, kh, kw = ksize
    sd, sh, sw = kstride
    pd, ph, pw = kpad

    w = params["conv_w"]                               # (Cout, Cin, kd, kh, kw)
    Cout, Cin = int(w.shape[0]), int(w.shape[1])
    b = params["conv_b"] if bias else jnp.zeros((Cout,), jnp.float32)
    in_dtype = x_ncdhw.dtype

    # NCDHW -> NDHWC, cast to bf16 ONCE, zero-pad spatially.
    x = jnp.transpose(x_ncdhw, (0, 2, 3, 4, 1)).astype(jnp.bfloat16)
    xp = jnp.pad(x, ((0, 0), (pd, pd), (ph, ph), (pw, pw), (0, 0)))
    N, Dp, Hp, Wp, _ = xp.shape
    Do = (Dp - kd) // sd + 1
    Ho = (Hp - kh) // sh + 1
    Wo = (Wp - kw) // sw + 1

    # Fold the kh*kw spatial taps (and Cin) onto the lane axis: K = kh*kw*Cin per dot.
    # For Cin << 128 this costs no extra VMEM (lanes were padded to 128 anyway) and turns
    # kd*kh*kw tiny dots into kd wide dots; strides are absorbed into the fold.
    taps = []
    for hb in range(kh):
        for wc in range(kw):
            taps.append(xp[:, :, hb:hb + (Ho - 1) * sh + 1:sh,
                              wc:wc + (Wo - 1) * sw + 1:sw, :])
    Kf = kh * kw * Cin
    x_fold = jnp.stack(taps, axis=4).reshape(N, Dp, Ho * Wo, Kf)   # bf16

    # M-tiling of the flattened output-spatial axis (256-row tiles; multiple of 8).
    M = Ho * Wo
    tm = 256 if M >= 256 else _round_up(M, 8)
    Mp = _round_up(M, tm)
    n_mt = Mp // tm
    if Mp > M:
        x_fold = jnp.pad(x_fold, ((0, 0), (0, 0), (0, Mp - M), (0, 0)))

    # Weights -> (kd, Kf, Cp) bf16; fold order (b, c, ci) matches x_fold.  Lane-dense Cout
    # padding: 128 for narrow Cout, 256 for wide Cout (full v6e/v7x MXU width).
    Cp = _round_up(Cout, 128) if Cout <= 128 else _round_up(Cout, 256)
    w_t = jnp.transpose(w, (2, 3, 4, 1, 0)).reshape(kd, Kf, Cout).astype(jnp.float32)
    w_t = jnp.pad(w_t, ((0, 0), (0, 0), (0, Cp - Cout))).astype(jnp.bfloat16)

    # Fold conv bias + eval-mode BatchNorm into one per-channel affine (f32).
    if norm:
        gamma, beta = params["bn_gamma"], params["bn_beta"]
        mean, var = params["bn_mean"], params["bn_var"]
        scale = gamma / jnp.sqrt(var + eps)
        shift = beta + (b - mean) * scale
    else:
        scale = jnp.ones((Cout,), jnp.float32)
        shift = b.astype(jnp.float32)
    scale = jnp.pad(scale.astype(jnp.float32), (0, Cp - Cout)).reshape(1, Cp)
    shift = jnp.pad(shift.astype(jnp.float32), (0, Cp - Cout)).reshape(1, Cp)

    # VMEM budget from the actual (lane/sublane padded) block sizes, with headroom.
    lane = 128
    in_blk = tm * _round_up(Kf, lane) * 2                 # bf16 input tile
    w_blk = kd * _round_up(Kf, 16) * Cp * 2               # bf16 resident weights
    out_blk = tm * Cp * 2                                 # bf16 output tile
    aff_blk = 8 * Cp * 4                                  # f32 scale / shift (each)
    acc_blk = tm * Cp * 4                                 # f32 accumulator scratch
    vmem_need = 2 * (in_blk + out_blk + 2 * aff_blk) + 2 * w_blk + acc_blk
    vmem_limit = int(min(max(2 * vmem_need + (4 << 20), 16 << 20), 100 << 20))

    grid_steps = N * n_mt * Do * kd
    flops = 2 * grid_steps * tm * Kf * Cp
    transcendentals = N * Do * Mp * Cp if act in ("sigmoid", "tanh") else 0
    bytes_accessed = int(grid_steps * tm * Kf * 2 + w_t.size * 2
                         + scale.size * 4 + shift.size * 4
                         + N * Do * Mp * Cp * 2)

    out_flat = pl.pallas_call(
        functools.partial(_fused_conv3d_block_kernel, kd=kd, act=act),
        out_shape=jax.ShapeDtypeStruct((N, Do, Mp, Cp), jnp.bfloat16),
        grid_spec=pltpu.PrefetchScalarGridSpec(
            num_scalar_prefetch=0,
            grid=(N, n_mt, Do, kd),            # reduction (kd) innermost
            in_specs=[
                # One depth plane per step: only the planes needed for the current output
                # depth are resident (depth tiling); next-plane DMA overlaps the dot.
                pl.BlockSpec((1, 1, tm, Kf), lambda n, m, d, a: (n, d * sd + a, m, 0)),
                # Whole weight stack resident across the entire grid (constant index map).
                pl.BlockSpec((kd, Kf, Cp), lambda n, m, d, a: (0, 0, 0)),
                pl.BlockSpec((1, Cp), lambda n, m, d, a: (0, 0)),
                pl.BlockSpec((1, Cp), lambda n, m, d, a: (0, 0)),
            ],
            out_specs=pl.BlockSpec((1, 1, tm, Cp), lambda n, m, d, a: (n, d, m, 0)),
            scratch_shapes=[pltpu.VMEM((tm, Cp), jnp.float32)],
        ),
        compiler_params=pltpu.CompilerParams(
            dimension_semantics=("parallel", "parallel", "arbitrary", "arbitrary"),
            vmem_limit_bytes=vmem_limit),
        cost_estimate=pl.CostEstimate(flops=flops,
                                      transcendentals=transcendentals,
                                      bytes_accessed=bytes_accessed),
    )(x_fold, w_t, scale, shift)

    # Drop M padding rows / padded channels; restore PyTorch's NCDHW convention.
    out = out_flat[:, :, :M, :Cout].reshape(N, Do, Ho, Wo, Cout)
    return jnp.transpose(out, (0, 4, 1, 2, 3)).astype(in_dtype)


# ---------------------------- pure-JAX reference ---------------------------- #

def reference_block(x_ncdhw, params, *, size, stride, padding, norm, act, bias,
                    eps=1e-5):
    ksize, kstride, kpad = _triple(size), _triple(stride), _triple(padding)
    w = params["conv_w"]
    Cout = w.shape[0]
    b = params["conv_b"] if bias else jnp.zeros((Cout,), jnp.float32)
    y = jax.lax.conv_general_dilated(
        x_ncdhw, w, window_strides=kstride,
        padding=[(p, p) for p in kpad],
        dimension_numbers=("NCDHW", "OIDHW", "NCDHW"))
    y = y + b.reshape(1, Cout, 1, 1, 1)
    if norm:
        g = params["bn_gamma"].reshape(1, Cout, 1, 1, 1)
        be = params["bn_beta"].reshape(1, Cout, 1, 1, 1)
        m = params["bn_mean"].reshape(1, Cout, 1, 1, 1)
        v = params["bn_var"].reshape(1, Cout, 1, 1, 1)
        y = (y - m) / jnp.sqrt(v + eps) * g + be
    if act == "relu":
        y = jnp.maximum(y, 0.0)
    elif act == "sigmoid":
        y = jax.nn.sigmoid(y)
    elif act == "tanh":
        y = jnp.tanh(y)
    return y


# ---------------------------------- main ------------------------------------ #

if __name__ == "__main__":
    # BasicBlock_3DCONV(dim_in, dim_out, bias, size, stride, padding, norm, act, drop)
    dim_in, dim_out = 4, 8
    size, stride, padding = 3, 1, 1
    bias, norm, act, drop = True, True, "relu", 0.0

    N, D, H, W = 2, 8, 8, 8

    key = jax.random.PRNGKey(0)
    k_x, k_w, k_b, k_g, k_be, k_m, k_v = jax.random.split(key, 7)

    x = jax.random.normal(k_x, (N, dim_in, D, H, W), dtype=jnp.float32)

    params = {
        "conv_w": 0.1 * jax.random.normal(
            k_w, (dim_out, dim_in, size, size, size), dtype=jnp.float32),
        "conv_b": 0.1 * jax.random.normal(k_b, (dim_out,), dtype=jnp.float32),
        "bn_gamma": 1.0 + 0.1 * jax.random.normal(k_g, (dim_out,), dtype=jnp.float32),
        "bn_beta": 0.1 * jax.random.normal(k_be, (dim_out,), dtype=jnp.float32),
        "bn_mean": 0.1 * jax.random.normal(k_m, (dim_out,), dtype=jnp.float32),
        "bn_var": jnp.abs(1.0 + 0.1 * jax.random.normal(
            k_v, (dim_out,), dtype=jnp.float32)),
    }

    out = basic_block_3dconv(x, params, size=size, stride=stride,
                             padding=padding, norm=norm, act=act,
                             drop=drop, bias=bias)
    out = jax.block_until_ready(out)

    ref = reference_block(x, params, size=size, stride=stride, padding=padding,
                          norm=norm, act=act, bias=bias)
    ref = jax.block_until_ready(ref)

    assert out.shape == ref.shape == (N, dim_out, D, H, W), (out.shape, ref.shape)
    max_err = float(jnp.max(jnp.abs(out - ref)))
    # bf16 matmul inputs / bf16 output vs. f32 reference -> loosened tolerance.
    assert jnp.allclose(out, ref, rtol=5e-2, atol=5e-2), max_err

    print("KERNEL_OK")
</pallas_src>

<mosaic_0001>
module attributes {stable_mosaic.version = 11 : i64} {
  func.func @_fused_conv3d_block_kernel(%arg0: i32, %arg1: i32, %arg2: i32, %arg3: i32, %arg4: memref<1x1x64x36xbf16, #tpu.memory_space<vmem>>, %arg5: memref<3x36x128xbf16, #tpu.memory_space<vmem>>, %arg6: memref<1x128xf32, #tpu.memory_space<vmem>>, %arg7: memref<1x128xf32, #tpu.memory_space<vmem>>, %arg8: memref<1x1x64x128xbf16, #tpu.memory_space<vmem>>, %arg9: memref<64x128xf32, #tpu.memory_space<vmem>>) attributes {dimension_semantics = [#tpu.dimension_semantics<parallel>, #tpu.dimension_semantics<parallel>, #tpu.dimension_semantics<arbitrary>, #tpu.dimension_semantics<arbitrary>], iteration_bounds = array<i64: 2, 1, 8, 3>, scalar_prefetch = 0 : i64, scratch_operands = 1 : i64, tpu.core_type = #tpu.core_type<tc>, window_params = [{transform_indices = @transform_0, window_bounds = array<i64: 1, 1, 64, 36>}, {pipeline_mode = #tpu.pipeline_mode<synchronous>, transform_indices = @transform_1, window_bounds = array<i64: 3, 36, 128>}, {pipeline_mode = #tpu.pipeline_mode<synchronous>, transform_indices = @transform_2, window_bounds = array<i64: 1, 128>}, {pipeline_mode = #tpu.pipeline_mode<synchronous>, transform_indices = @transform_3, window_bounds = array<i64: 1, 128>}, {transform_indices = @transform_4, window_bounds = array<i64: 1, 1, 64, 128>}]} {
    %c0_i32 = arith.constant 0 : i32
    %0 = arith.cmpi eq, %arg3, %c0_i32 : i32
    %1 = arith.extui %0 : i1 to i32
    %c0_i32_0 = arith.constant 0 : i32
    %2 = arith.cmpi ne, %1, %c0_i32_0 : i32
    scf.if %2 {
      %cst_11 = arith.constant 0.000000e+00 : f32
      %15 = vector.broadcast %cst_11 : f32 to vector<64x128xf32>
      %c0_12 = arith.constant 0 : index
      %c0_13 = arith.constant 0 : index
      %16 = vector.load %arg9[%c0_12, %c0_13] : memref<64x128xf32, #tpu.memory_space<vmem>>, vector<64x128xf32>
      tpu.vector_store %arg9[%c0_12, %c0_13], %15 {strides = array<i32>} : memref<64x128xf32, #tpu.memory_space<vmem>>, vector<64x128xf32>,
    } else {
    }
    %c0 = arith.constant 0 : index
    %c0_1 = arith.constant 0 : index
    %3 = vector.load %arg9[%c0, %c0_1] : memref<64x128xf32, #tpu.memory_space<vmem>>, vector<64x128xf32>
    %c0_2 = arith.constant 0 : index
    %c0_3 = arith.constant 0 : index
    %c0_4 = arith.constant 0 : index
    %c0_5 = arith.constant 0 : index
    %4 = vector.load %arg4[%c0_2, %c0_3, %c0_4, %c0_5] : memref<1x1x64x36xbf16, #tpu.memory_space<vmem>>, vector<1x1x64x36xbf16>
    %5 = vector.shape_cast %4 : vector<1x1x64x36xbf16> to vector<64x36xbf16>
    %6 = arith.index_cast %arg3 : i32 to index
    %c0_6 = arith.constant 0 : index
    %c0_7 = arith.constant 0 : index
    %7 = vector.load %arg5[%6, %c0_6, %c0_7] : memref<3x36x128xbf16, #tpu.memory_space<vmem>>, vector<1x36x128xbf16>
    %8 = vector.shape_cast %7 : vector<1x36x128xbf16> to vector<36x128xbf16>
    %cst = arith.constant dense<0.000000e+00> : vector<64x128xf32>
    %9 = tpu.matmul %5, %8, %cst {dimension_numbers = #tpu.dot_dimension_numbers<[1], [0], [0], [1], [0, 0, 1, 1], [], []>} : vector<64x36xbf16>, vector<36x128xbf16>, vector<64x128xf32> -> vector<64x128xf32>
    %10 = arith.addf %3, %9 : vector<64x128xf32>
    %c0_8 = arith.constant 0 : index
    %c0_9 = arith.constant 0 : index
    %11 = vector.load %arg9[%c0_8, %c0_9] : memref<64x128xf32, #tpu.memory_space<vmem>>, vector<64x128xf32>
    tpu.vector_store %arg9[%c0_8, %c0_9], %10 {strides = array<i32>} : memref<64x128xf32, #tpu.memory_space<vmem>>, vector<64x128xf32>,
    %c2_i32 = arith.constant 2 : i32
    %12 = arith.cmpi eq, %arg3, %c2_i32 : i32
    %13 = arith.extui %12 : i1 to i32
    %c0_i32_10 = arith.constant 0 : i32
    %14 = arith.cmpi ne, %13, %c0_i32_10 : i32
    scf.if %14 {
      %c0_11 = arith.constant 0 : index
      %c0_12 = arith.constant 0 : index
      %15 = vector.load %arg9[%c0_11, %c0_12] : memref<64x128xf32, #tpu.memory_space<vmem>>, vector<64x128xf32>
      %c0_13 = arith.constant 0 : index
      %c0_14 = arith.constant 0 : index
      %16 = vector.load %arg6[%c0_13, %c0_14] : memref<1x128xf32, #tpu.memory_space<vmem>>, vector<1x128xf32>
      %17 = vector.broadcast %16 : vector<1x128xf32> to vector<64x128xf32>
      %18 = arith.mulf %15, %17 : vector<64x128xf32>
      %c0_15 = arith.constant 0 : index
      %c0_16 = arith.constant 0 : index
      %19 = vector.load %arg7[%c0_15, %c0_16] : memref<1x128xf32, #tpu.memory_space<vmem>>, vector<1x128xf32>
      %20 = vector.broadcast %19 : vector<1x128xf32> to vector<64x128xf32>
      %21 = arith.addf %18, %20 : vector<64x128xf32>
      %cst_17 = arith.constant 0.000000e+00 : f32
      %22 = vector.broadcast %cst_17 : f32 to vector<64x128xf32>
      %23 = arith.maximumf %21, %22 : vector<64x128xf32>
      %24 = arith.truncf %23 : vector<64x128xf32> to vector<64x128xbf16>
      %c0_18 = arith.constant 0 : index
      %c0_19 = arith.constant 0 : index
      %c0_20 = arith.constant 0 : index
      %c0_21 = arith.constant 0 : index
      %25 = vector.load %arg8[%c0_18, %c0_19, %c0_20, %c0_21] : memref<1x1x64x128xbf16, #tpu.memory_space<vmem>>, vector<1x1x64x128xbf16>
      %26 = vector.shape_cast %25 : vector<1x1x64x128xbf16> to vector<64x128xbf16>
      %27 = vector.shape_cast %24 : vector<64x128xbf16> to vector<1x1x64x128xbf16>
      tpu.vector_store %arg8[%c0_18, %c0_19, %c0_20, %c0_21], %27 {strides = array<i32>} : memref<1x1x64x128xbf16, #tpu.memory_space<vmem>>, vector<1x1x64x128xbf16>,
    } else {
    }
    return
  }
  func.func @transform_0(%arg0: i32, %arg1: i32, %arg2: i32, %arg3: i32) -> (i32, i32, i32, i32) {
    %c1_i32 = arith.constant 1 : i32
    %0 = arith.muli %arg2, %c1_i32 : i32
    %1 = arith.addi %0, %arg3 : i32
    %c0_i32 = arith.constant 0 : i32
    %c0_i32_0 = arith.constant 0 : i32
    return %arg0, %1, %arg1, %c0_i32 : i32, i32, i32, i32
  }
  func.func @transform_1(%arg0: i32, %arg1: i32, %arg2: i32, %arg3: i32) -> (i32, i32, i32) {
    %c0_i32 = arith.constant 0 : i32
    %c0_i32_0 = arith.constant 0 : i32
    %c0_i32_1 = arith.constant 0 : i32
    %c0_i32_2 = arith.constant 0 : i32
    return %c0_i32, %c0_i32_0, %c0_i32_1 : i32, i32, i32
  }
  func.func @transform_2(%arg0: i32, %arg1: i32, %arg2: i32, %arg3: i32) -> (i32, i32) {
    %c0_i32 = arith.constant 0 : i32
    %c0_i32_0 = arith.constant 0 : i32
    %c0_i32_1 = arith.constant 0 : i32
    return %c0_i32, %c0_i32_0 : i32, i32
  }
  func.func @transform_3(%arg0: i32, %arg1: i32, %arg2: i32, %arg3: i32) -> (i32, i32) {
    %c0_i32 = arith.constant 0 : i32
    %c0_i32_0 = arith.constant 0 : i32
    %c0_i32_1 = arith.constant 0 : i32
    return %c0_i32, %c0_i32_0 : i32, i32
  }
  func.func @transform_4(%arg0: i32, %arg1: i32, %arg2: i32, %arg3: i32) -> (i32, i32, i32, i32) {
    %c0_i32 = arith.constant 0 : i32
    %c0_i32_0 = arith.constant 0 : i32
    return %arg0, %arg2, %arg1, %c0_i32 : i32, i32, i32, i32
  }
}

</mosaic_0001>

<llo_original>
// kernel: tpu_custom_call.1
$region0: #{tpu_custom_call.1}
  #allocation0 [shape = 'u32[]', space=smem, size = 0x4, offset = 0x4, fixed_abs, tag = 'smem constant byte address 0x4 - core index']
  #allocation1 [shape = 'u32[72,128]{1,0:T(1,128)}', space=vmem, size = 0x9000, scoped, tag = 'internal scratch']
  #allocation2 [shape = 'f32[64,128]{1,0:T(8,128)}', space=vmem, size = 0x8000, scoped, tag = 'scratch operand']
  %s0 = inlined_call_operand.vmem [shape: bf16[2,10,64,36], index: 0, kind: input, shape index: {}]
  %s1 = inlined_call_operand.vmem [shape: bf16[3,36,128], index: 1, kind: input, shape index: {}]
  %s2 = inlined_call_operand.vmem [shape: f32[1,128], index: 2, kind: input, shape index: {}]
  %s3 = inlined_call_operand.vmem [shape: f32[1,128], index: 3, kind: input, shape index: {}]
  %s4 = inlined_call_operand.hbm [shape: bf16[2,8,64,128], index: 4, kind: output, shape index: {}]
  %s5 = sld [smem:[#allocation0]]
  $region57: #{tpu_custom_call.1} parent=0
    _
  %s7 = ssub.s32 1, %s5
  %s8 = scalar_select 0, %s7, %s5
  $region1: #{tpu_custom_call.1} parent=0
    #allocation3 [shape = 'u8[32768]{0}', space=vmem, size = 0x8000, scoped, tag = 'output window, operand 0']
    #allocation4 [shape = 's32[2]{0}', space=sflag, size = 0x8, scoped, tag = 'scoped memory for tpu_custom_call.1']
    %9 = vsyncpa [#allocation4], 0
    %s10 = scalar_lea.sflag [#allocation4], 1
    %11 = vsyncpa %s10, 0
    loop: start=0, step=1, limit=50
    $region2: #{tpu_custom_call.1} parent=1 // loop_pre_header
      _
    $region3: #{tpu_custom_call.1} parent=1 // loop_header
      %s13 = sphi 0, %s17
      %p14 = scmp.ge.s32.totalorder %s13, 50
      %s20 = sphi 0, %s46
      %s21 = sphi 0, %s42
      %s22 = sphi 0, %s38
      %s23 = sphi 0, %s34
      %s24 = sphi 0, %s20
      %s25 = sphi 0, %s21
      %s26 = sphi 0, %s22
      %s27 = sphi 0, %s23
      %s28 = sphi 0, %s24
      %s29 = sphi 0, %s25
      %s30 = sphi 0, %s26
      %s31 = sphi 0, %s27
      %s55 = sphi 0, %s57
      %s58 = sphi 0, %s55
      %s59 = sphi 0, %s58
      %s75 = sphi 0, %s59
      %s79 = sphi 0, %s79
      %s81 = sphi 0, %s79
      %s82 = sphi 0, %s81
      %s96 = sphi 0, %s82
      %s100 = sphi 0, %s100
      %s102 = sphi 0, %s100
      %s103 = sphi 0, %s102
      %s117 = sphi 0, %s103
      %s121 = sphi 0, %s121
      %s123 = sphi 0, %s121
      %s124 = sphi 0, %s123
      %s138 = sphi 0, %s124
      %s148 = sphi 0, %s150
      %s151 = sphi 0, %s148
      %s152 = sphi 0, %s151
      %s168 = sphi 0, %s152
    $region4: #{tpu_custom_call.1} parent=1 // loop_header_branch
      %16 = sbr.rel (%p14) target = $region8
    $region5: #{tpu_custom_call.1} parent=1 // loop_body
      %s18 = ssub.s32 %s13, 1
      %s19 = ssub.s32 %s13, 2
      %s32 = sadd.s32 1, %s23
      %p33 = scmp.ge.s32.totalorder %s32, 3
      %s34 = scalar_select %p33, 0, %s32
      %s35 = sadd.s32 1, %s22
      %s36 = scalar_select %p33, %s35, %s22
      %p37 = scmp.ge.s32.totalorder %s36, 8
      %s38 = scalar_select %p37, 0, %s36
      %s39 = sadd.s32 1, %s21
      %s40 = scalar_select %p37, %s39, %s21
      %p41 = scmp.ge.s32.totalorder %s40, 1
      %s42 = scalar_select %p41, 0, %s40
      %s43 = sadd.s32 1, %s20
      %s44 = scalar_select %p41, %s43, %s20
      %p45 = scmp.ge.s32.totalorder %s44, 2
      %s46 = scalar_select %p45, 0, %s44
      %s47 = sadd.s32 %s22, %s23
      %s48 = sadd.s32 %s38, %s34
      %s49 = ssub.s32 %s20, %s46
      %s50 = ssub.s32 %s47, %s48
      %s51 = sor.u32 %s49, %s50
      %s52 = ssub.s32 %s21, %s42
      %s53 = sor.u32 %s51, %s52
      %p54 = scmp.eq.s32.totalorder %s53, 0
      %s56 = sadd.s32 %s55, 1
      %s57 = scalar_select %p54, %s55, %s56
      %p60 = pneg %p54
      %p61 = scmp.eq.s32.totalorder %s13, 47
      %p62 = por %p60, %p61
      %p63 = scmp.ne.s32.totalorder %s55, %s58
      %p64 = scmp.eq.s32.totalorder %s13, 0
      %p65 = por %p63, %p64
      %p66 = scmp.ne.s32.totalorder %s55, %s58
      %p67 = scmp.eq.s32.totalorder %s18, 47
      %p68 = por %p66, %p67
      %p69 = scmp.ne.s32.totalorder %s58, %s59
      %p70 = scmp.eq.s32.totalorder %s18, 0
      %p71 = por %p69, %p70
      %p72 = scmp.ne.s32.totalorder %s58, %s59
      %p73 = scmp.eq.s32.totalorder %s19, 47
      %p74 = por %p72, %p73
      %p76 = scmp.ne.s32.totalorder %s59, %s75
      %p77 = scmp.eq.s32.totalorder %s19, 0
      %p78 = por %p76, %p77
      %s80 = sadd.s32 %s79, 1
      %p83 = scmp.eq.s32.totalorder %s13, 47
      %p84 = scmp.ne.s32.totalorder %s79, %s81
      %p85 = scmp.eq.s32.totalorder %s13, 0
      %p86 = por %p84, %p85
      %p87 = scmp.ne.s32.totalorder %s79, %s81
      %p88 = scmp.eq.s32.totalorder %s18, 47
      %p89 = por %p87, %p88
      %p90 = scmp.ne.s32.totalorder %s81, %s82
      %p91 = scmp.eq.s32.totalorder %s18, 0
      %p92 = por %p90, %p91
      %p93 = scmp.ne.s32.totalorder %s81, %s82
      %p94 = scmp.eq.s32.totalorder %s19, 47
      %p95 = por %p93, %p94
      %p97 = scmp.ne.s32.totalorder %s82, %s96
      %p98 = scmp.eq.s32.totalorder %s19, 0
      %p99 = por %p97, %p98
      %s101 = sadd.s32 %s100, 1
      %p104 = scmp.eq.s32.totalorder %s13, 47
      %p105 = scmp.ne.s32.totalorder %s100, %s102
      %p106 = scmp.eq.s32.totalorder %s13, 0
      %p107 = por %p105, %p106
      %p108 = scmp.ne.s32.totalorder %s100, %s102
      %p109 = scmp.eq.s32.totalorder %s18, 47
      %p110 = por %p108, %p109
      %p111 = scmp.ne.s32.totalorder %s102, %s103
      %p112 = scmp.eq.s32.totalorder %s18, 0
      %p113 = por %p111, %p112
      %p114 = scmp.ne.s32.totalorder %s102, %s103
      %p115 = scmp.eq.s32.totalorder %s19, 47
      %p116 = por %p114, %p115
      %p118 = scmp.ne.s32.totalorder %s103, %s117
      %p119 = scmp.eq.s32.totalorder %s19, 0
      %p120 = por %p118, %p119
      %s122 = sadd.s32 %s121, 1
      %p125 = scmp.eq.s32.totalorder %s13, 47
      %p126 = scmp.ne.s32.totalorder %s121, %s123
      %p127 = scmp.eq.s32.totalorder %s13, 0
      %p128 = por %p126, %p127
      %p129 = scmp.ne.s32.totalorder %s121, %s123
      %p130 = scmp.eq.s32.totalorder %s18, 47
      %p131 = por %p129, %p130
      %p132 = scmp.ne.s32.totalorder %s123, %s124
      %p133 = scmp.eq.s32.totalorder %s18, 0
      %p134 = por %p132, %p133
      %p135 = scmp.ne.s32.totalorder %s123, %s124
      %p136 = scmp.eq.s32.totalorder %s19, 47
      %p137 = por %p135, %p136
      %p139 = scmp.ne.s32.totalorder %s124, %s138
      %p140 = scmp.eq.s32.totalorder %s19, 0
      %p141 = por %p139, %p140
      %s142 = ssub.s32 %s20, %s46
      %s143 = ssub.s32 %s22, %s38
      %s144 = sor.u32 %s142, %s143
      %s145 = ssub.s32 %s21, %s42
      %s146 = sor.u32 %s144, %s145
      %p147 = scmp.eq.s32.totalorder %s146, 0
      %s149 = sadd.s32 %s148, 1
      %s150 = scalar_select %p147, %s148, %s149
      %p153 = pneg %p147
      %p154 = scmp.eq.s32.totalorder %s13, 47
      %p155 = por %p153, %p154
      %p156 = scmp.ne.s32.totalorder %s148, %s151
      %p157 = scmp.eq.s32.totalorder %s13, 0
      %p158 = por %p156, %p157
      %p159 = scmp.ne.s32.totalorder %s148, %s151
      %p160 = scmp.eq.s32.totalorder %s18, 47
      %p161 = por %p159, %p160
      %p162 = scmp.ne.s32.totalorder %s151, %s152
      %p163 = scmp.eq.s32.totalorder %s18, 0
      %p164 = por %p162, %p163
      %p165 = scmp.ne.s32.totalorder %s151, %s152
      %p166 = scmp.eq.s32.totalorder %s19, 47
      %p167 = por %p165, %p166
      %p169 = scmp.ne.s32.totalorder %s152, %s168
      %p170 = scmp.eq.s32.totalorder %s19, 0
      %p171 = por %p169, %p170
      %p172 = scmp.le.s32.totalorder 1, %s13
      %p173 = scmp.lt.s32.totalorder %s13, 49
      %p174 = pnand %p172, %p173
      %p175 = pneg %p174
      // Predicated region
      $region9: #{tpu_custom_call.1} parent=5 // pred_check
        _
      $region10: #{tpu_custom_call.1} parent=5 // pred_check_branch
        %177 = sbr.rel (%p174) target = $region12
      $region11: #{tpu_custom_call.1} parent=5 // pred_region
        %s178 = ssub.s32 %s13, 1
        // Predicated region
        $region13: #{tpu_custom_call.1} parent=11 // pred_check
          %p179 = pneg %p92
        $region14: #{tpu_custom_call.1} parent=11 // pred_check_branch
          %181 = sbr.rel (%p179) target = $region16
        $region15: #{tpu_custom_call.1} parent=11 // pred_region
          _
        $region16: #{tpu_custom_call.1} parent=11 // pred_fallthru
          _
        // Predicated region
        $region17: #{tpu_custom_call.1} parent=11 // pred_check
          %p182 = pneg %p113
        $region18: #{tpu_custom_call.1} parent=11 // pred_check_branch
          %184 = sbr.rel (%p182) target = $region20
        $region19: #{tpu_custom_call.1} parent=11 // pred_region
          _
        $region20: #{tpu_custom_call.1} parent=11 // pred_fallthru
          _
        // Predicated region
        $region21: #{tpu_custom_call.1} parent=11 // pred_check
          %p185 = pneg %p134
        $region22: #{tpu_custom_call.1} parent=11 // pred_check_branch
          %187 = sbr.rel (%p185) target = $region24
        $region23: #{tpu_custom_call.1} parent=11 // pred_region
          _
        $region24: #{tpu_custom_call.1} parent=11 // pred_fallthru
          _
      $region12: #{tpu_custom_call.1} parent=5 // pred_fallthru
        _
      %p188 = scmp.lt.s32.totalorder %s13, 48
      // Predicated region
      $region25: #{tpu_custom_call.1} parent=5 // pred_check
        %p189 = pneg %p188
      $region26: #{tpu_custom_call.1} parent=5 // pred_check_branch
        %191 = sbr.rel (%p189) target = $region28
      $region27: #{tpu_custom_call.1} parent=5 // pred_region
        // Predicated region
        $region29: #{tpu_custom_call.1} parent=27 // pred_check
          %p192 = pneg %p65
        $region30: #{tpu_custom_call.1} parent=27 // pred_check_branch
          %194 = sbr.rel (%p192) target = $region32
        $region31: #{tpu_custom_call.1} parent=27 // pred_region
          %s195 = sadd.s32 %s22, %s23
          %s196 = smul.u32 8, %s21
          %p197 = scmp.lt.s32.totalorder %s20, 1
          %s198 = scalar_select %p197, %s20, 1
          %p199 = scmp.lt.s32.totalorder %s195, 9
          %s200 = scalar_select %p199, %s195, 9
          %p201 = scmp.lt.s32.totalorder %s196, 7
          %s202 = scalar_select %p201, %s196, 7
          %s203 = smul.addr %s200, 8
          %s204 = sadd.s32 %s202, %s203
          %s205 = smul.addr %s198, 80
          %s206 = sadd.s32 %s204, %s205
          %s207 = smul.addr %s206, 4
          %s208 = scalar_lea.vmem %s0, %s207
          %s209 = sadd.s32 %s22, %s23
          %s210 = smul.u32 8, %s21
        $region32: #{tpu_custom_call.1} parent=27 // pred_fallthru
          _
      $region28: #{tpu_custom_call.1} parent=5 // pred_fallthru
        _
      %p211 = scmp.le.s32.totalorder 1, %s13
      %p212 = scmp.lt.s32.totalorder %s13, 49
      %p213 = pnand %p211, %p212
      %p214 = pneg %p213
      // Predicated region
      $region33: #{tpu_custom_call.1} parent=5 // pred_check
        _
      $region34: #{tpu_custom_call.1} parent=5 // pred_check_branch
        %216 = sbr.rel (%p213) target = $region36
      $region35: #{tpu_custom_call.1} parent=5 // pred_region
        %s217 = ssub.s32 %s13, 1
        %s218 = sadd.s32 %s26, %s27
        %s219 = smul.u32 8, %s25
        %p220 = scmp.lt.s32.totalorder %s24, 1
        %s221 = scalar_select %p220, %s24, 1
        %p222 = scmp.lt.s32.totalorder %s218, 9
        %s223 = scalar_select %p222, %s218, 9
        %p224 = scmp.lt.s32.totalorder %s219, 7
        %s225 = scalar_select %p224, %s219, 7
        %s226 = smul.addr %s223, 8
        %s227 = sadd.s32 %s225, %s226
        %s228 = smul.addr %s221, 80
        %s229 = sadd.s32 %s227, %s228
        %s230 = smul.addr %s229, 4
        %s231 = scalar_lea.vmem %s0, %s230
        %p232 = pneg %p71
        %p233 = pneg %p68
        %p234 = pneg %p92
        %p235 = pneg %p89
        %p236 = pneg %p113
        %p237 = pneg %p110
        %p238 = pneg %p134
        %p239 = pneg %p131
        %p240 = pneg %p164
        %p241 = pneg %p161
        %s242 = sand.u32 %s151, 1
        %s243 = scalar_lea.sflag [#allocation4], %s242
        %s244 = sand.u32 %s151, 1
        %s245 = smul.addr %s244, 32
        %s246 = scalar_lea.vmem [#allocation3], %s245
        %s247 = sadd.s32 %s26, %s27
        %s248 = smul.u32 8, %s25
        %p249 = scmp.lt.s32.totalorder %s24, 1
        %s250 = scalar_select %p249, %s24, 1
        %p251 = scmp.lt.s32.totalorder %s247, 9
        %s252 = scalar_select %p251, %s247, 9
        %p253 = scmp.lt.s32.totalorder %s248, 7
        %s254 = scalar_select %p253, %s248, 7
        %s255 = smul.addr %s252, 8
        %s256 = sadd.s32 %s254, %s255
        %s257 = smul.addr %s250, 80
        %s258 = sadd.s32 %s256, %s257
        %s259 = smul.addr %s258, 4
        %s260 = scalar_lea.vmem %s0, %s259
        %s261 = sadd.s32 %s26, %s27
        %s262 = smul.u32 8, %s25
        %s263 = smul.u32 8, %s25
        %p265 = scmp.eq.s32.totalorder %s27, 0
        // Predicated region
        $region37: #{tpu_custom_call.1} parent=35 // pred_check
          %p266 = pneg %p265
        $region38: #{tpu_custom_call.1} parent=35 // pred_check_branch
          %268 = sbr.rel (%p266) target = $region40
        $region39: #{tpu_custom_call.1} parent=35 // pred_region
          %269 = vst [vmem:[#allocation2] sm:$0xff] 0.0
          %270 = vst [vmem:[#allocation2 + $0x8] sm:$0xff] 0.0
          %271 = vst [vmem:[#allocation2 + $0x10] sm:$0xff] 0.0
          %272 = vst [vmem:[#allocation2 + $0x18] sm:$0xff] 0.0
          %273 = vst [vmem:[#allocation2 + $0x20] sm:$0xff] 0.0
          %274 = vst [vmem:[#allocation2 + $0x28] sm:$0xff] 0.0
          %275 = vst [vmem:[#allocation2 + $0x30] sm:$0xff] 0.0
          %276 = vst [vmem:[#allocation2 + $0x38] sm:$0xff] 0.0
        $region40: #{tpu_custom_call.1} parent=35 // pred_fallthru
          _
        %v277 = vld [vmem:[#allocation2] sm:$0xff]
        %v278 = vld [vmem:[#allocation2 + $0x8] sm:$0xff]
        %v279 = vld [vmem:[#allocation2 + $0x10] sm:$0xff]
        %v280 = vld [vmem:[#allocation2 + $0x18] sm:$0xff]
        %v281 = vld [vmem:[#allocation2 + $0x20] sm:$0xff]
        %v282 = vld [vmem:[#allocation2 + $0x28] sm:$0xff]
        %v283 = vld [vmem:[#allocation2 + $0x30] sm:$0xff]
        %v284 = vld [vmem:[#allocation2 + $0x38] sm:$0xff]
        %v285 = vld [vmem:[%s260] sm:$0xf]
        %v286 = vld [vmem:[%s260 + $0x4] sm:$0xf]
        %v287 = vld [vmem:[%s260 + $0x8] sm:$0xf]
        %v288 = vld [vmem:[%s260 + $0xc] sm:$0xf]
        %v289 = vld [vmem:[%s260 + $0x10] sm:$0xf]
        %v290 = vld [vmem:[%s260 + $0x14] sm:$0xf]
        %v291 = vld [vmem:[%s260 + $0x18] sm:$0xf]
        %v292 = vld [vmem:[%s260 + $0x1c] sm:$0xf]
        %s293 = smul.u32 %s27, 5
        %s294 = smul.addr %s293, 4
        %s295 = scalar_lea.vmem %s1, %s294
        %v296 = vld [vmem:[%s295] sm:$0xf]
        %v297 = vld [vmem:[%s295 + $0x4] sm:$0xf]
        %v298 = vld [vmem:[%s295 + $0x8] sm:$0xf]
        %v299 = vld [vmem:[%s295 + $0xc] sm:$0xf]
        %v300 = vld [vmem:[%s295 + $0x10] sm:$0x3]
        %v309 = vunpack.c.l.b16 %v285
        %v310 = vunpack.c.l.b16 %v286
        %v311 = vunpack.c.l.b16 %v287
        %v312 = vunpack.c.l.b16 %v288
        %v313 = vunpack.c.l.b16 %v289
        %v314 = vunpack.c.l.b16 %v290
        %v315 = vunpack.c.l.b16 %v291
        %v316 = vunpack.c.l.b16 %v292
        %v317 = vpack.c.b16 %v310, %v309
        %v318 = vpack.c.b16 %v312, %v311
        %v319 = vpack.c.b16 %v314, %v313
        %v320 = vpack.c.b16 %v316, %v315
        %v326 = vunpack.c.l.b16 %v296
        %v327 = vunpack.c.l.b16 %v297
        %v328 = vunpack.c.l.b16 %v298
        %v329 = vunpack.c.l.b16 %v299
        %v330 = vunpack.c.l.b16 %v300
        %v331 = vpack.c.b16 %v327, %v326
        %v332 = vpack.c.b16 %v329, %v328
        %v333 = vpack.c.b16 %v330, %v330
        %vm336 = vcmask 293888
        %v338 = vsel %vm336, %v317, 0
        %v341 = vsel %vm336, %v318, 0
        %v344 = vsel %vm336, %v319, 0
        %v347 = vsel %vm336, %v320, 0
        %vm349 = vcmask 1041408
        %v351 = vsel %vm349, %v333, 0
        %353 = vmatpush.bf16.msra.mxu0 0
        %354 = vmatpush.bf16.msra.mxu0 0
        %355 = vmatpush.bf16.msra.mxu0 0
        %356 = vmatpush.bf16.msra.mxu0 0
        %357 = vmatpush.bf16.msra.mxu0 0
        %358 = vmatpush.bf16.msra.mxu0 %v351
        %359 = vmatpush.bf16.msra.mxu0 %v332
        %360 = vmatpush.bf16.msra.mxu0 %v331
        %361 = vmatmul.bf16.gmra.mxu0 %v338
        %v362 = vpop.f32.mrf.mxu0
        %v363 = vadd.f32 0.0, %v362
        %v364 = vpop.f32.mrf.mxu0
        %v365 = vadd.f32 0.0, %v364
        %366 = vmatmul.bf16.gmra.mxu0 %v341
        %v367 = vpop.f32.mrf.mxu0
        %v368 = vadd.f32 0.0, %v367
        %v369 = vpop.f32.mrf.mxu0
        %v370 = vadd.f32 0.0, %v369
        %371 = vmatmul.bf16.gmra.mxu0 %v344
        %v372 = vpop.f32.mrf.mxu0
        %v373 = vadd.f32 0.0, %v372
        %v374 = vpop.f32.mrf.mxu0
        %v375 = vadd.f32 0.0, %v374
        %376 = vmatmul.bf16.gmra.mxu0 %v347
        %v377 = vpop.f32.mrf.mxu0
        %v378 = vadd.f32 0.0, %v377
        %v379 = vpop.f32.mrf.mxu0
        %v380 = vadd.f32 0.0, %v379
        %381 = vdwg.mxu0
        %v382 = vadd.f32 %v277, %v363
        %v383 = vadd.f32 %v278, %v365
        %v384 = vadd.f32 %v279, %v368
        %v385 = vadd.f32 %v280, %v370
        %v386 = vadd.f32 %v281, %v373
        %v387 = vadd.f32 %v282, %v375
        %v388 = vadd.f32 %v283, %v378
        %v389 = vadd.f32 %v284, %v380
        %390 = vst [vmem:[#allocation2] sm:$0xff] %v382
        %391 = vst [vmem:[#allocation2 + $0x8] sm:$0xff] %v383
        %392 = vst [vmem:[#allocation2 + $0x10] sm:$0xff] %v384
        %393 = vst [vmem:[#allocation2 + $0x18] sm:$0xff] %v385
        %394 = vst [vmem:[#allocation2 + $0x20] sm:$0xff] %v386
        %395 = vst [vmem:[#allocation2 + $0x28] sm:$0xff] %v387
        %396 = vst [vmem:[#allocation2 + $0x30] sm:$0xff] %v388
        %397 = vst [vmem:[#allocation2 + $0x38] sm:$0xff] %v389
        %p398 = scmp.eq.s32.totalorder %s27, 2
        // Predicated region
        $region41: #{tpu_custom_call.1} parent=35 // pred_check
          %p399 = pneg %p398
        $region42: #{tpu_custom_call.1} parent=35 // pred_check_branch
          %401 = sbr.rel (%p399) target = $region44
        $region43: #{tpu_custom_call.1} parent=35 // pred_region
          %v402 = vld [vmem:[#allocation2] sm:$0xff]
          %v403 = vld [vmem:[#allocation2 + $0x8] sm:$0xff]
          %v404 = vld [vmem:[#allocation2 + $0x10] sm:$0xff]
          %v405 = vld [vmem:[#allocation2 + $0x18] sm:$0xff]
          %v406 = vld [vmem:[#allocation2 + $0x20] sm:$0xff]
          %v407 = vld [vmem:[#allocation2 + $0x28] sm:$0xff]
          %v408 = vld [vmem:[#allocation2 + $0x30] sm:$0xff]
          %v409 = vld [vmem:[#allocation2 + $0x38] sm:$0xff]
          %v410 = vld [vmem:[%s2] sm:$0x1]
          %v412 = vperm.slane %v410, 0
          %v414 = vmul.f32 %v402, %v412
          %v415 = vmul.f32 %v403, %v412
          %v416 = vmul.f32 %v404, %v412
          %v417 = vmul.f32 %v405, %v412
          %v418 = vmul.f32 %v406, %v412
          %v419 = vmul.f32 %v407, %v412
          %v420 = vmul.f32 %v408, %v412
          %v421 = vmul.f32 %v409, %v412
          %v422 = vld [vmem:[%s3] sm:$0x1]
          %v424 = vperm.slane %v422, 0
          %v426 = vadd.f32 %v414, %v424
          %v427 = vadd.f32 %v415, %v424
          %v428 = vadd.f32 %v416, %v424
          %v429 = vadd.f32 %v417, %v424
          %v430 = vadd.f32 %v418, %v424
          %v431 = vadd.f32 %v419, %v424
          %v432 = vadd.f32 %v420, %v424
          %v433 = vadd.f32 %v421, %v424
          %v434 = vmax.f32 %v426, 0.0
          %v435 = vmax.f32 %v427, 0.0
          %v436 = vmax.f32 %v428, 0.0
          %v437 = vmax.f32 %v429, 0.0
          %v438 = vmax.f32 %v430, 0.0
          %v439 = vmax.f32 %v431, 0.0
          %v440 = vmax.f32 %v432, 0.0
          %v441 = vmax.f32 %v433, 0.0
          %v442 = vpack.c.bf16 %v434, %v434
          %v443 = vpack.c.bf16 %v435, %v435
          %v444 = vpack.c.bf16 %v436, %v436
          %v445 = vpack.c.bf16 %v437, %v437
          %v446 = vpack.c.bf16 %v438, %v438
          %v447 = vpack.c.bf16 %v439, %v439
          %v448 = vpack.c.bf16 %v440, %v440
          %v449 = vpack.c.bf16 %v441, %v441
          %450 = vst [vmem:[%s246] sm:$0xf] %v442
          %451 = vst [vmem:[%s246 + $0x4] sm:$0xf] %v443
          %452 = vst [vmem:[%s246 + $0x8] sm:$0xf] %v444
          %453 = vst [vmem:[%s246 + $0xc] sm:$0xf] %v445
          %454 = vst [vmem:[%s246 + $0x10] sm:$0xf] %v446
          %455 = vst [vmem:[%s246 + $0x14] sm:$0xf] %v447
          %456 = vst [vmem:[%s246 + $0x18] sm:$0xf] %v448
          %457 = vst [vmem:[%s246 + $0x1c] sm:$0xf] %v449
        $region44: #{tpu_custom_call.1} parent=35 // pred_fallthru
          _
        %s458 = sand.u32 %s151, 1
        %s459 = scalar_lea.sflag [#allocation4], %s458
        %s460 = sand.u32 %s151, 1
        %s461 = smul.addr %s460, 32
        %s462 = scalar_lea.vmem [#allocation3], %s461
        // Predicated region
        $region45: #{tpu_custom_call.1} parent=35 // pred_check
          %p463 = pneg %p161
        $region46: #{tpu_custom_call.1} parent=35 // pred_check_branch
          %465 = sbr.rel (%p463) target = $region48
        $region47: #{tpu_custom_call.1} parent=35 // pred_region
          %s466 = smul.u32 8, %s25
          %468 = vsyncadd %s459, 0
          %s469 = smul.addr %s26, 8
          %s470 = sadd.s32 %s466, %s469
          %s471 = smul.addr %s24, 64
          %s472 = sadd.s32 %s470, %s471
          %s473 = smul.addr %s472, 4
          %s474 = scalar_lea.hbm %s4, %s473
          %s475 = sshll.u32 %s462, 4
          %s476 = int_to_ptr.vmem [resolvable:$true] %s475
          %s477 = sshll.u32 %s474, 4
          %s478 = int_to_ptr.hbm [resolvable:$true] %s477
          %483 = dma.vmem_to_hbm [thread:$0]  %s476, 512, %s478, %s459, 64, 64, 4
        $region48: #{tpu_custom_call.1} parent=35 // pred_fallthru
          _
      $region36: #{tpu_custom_call.1} parent=5 // pred_fallthru
        _
      %p484 = scmp.le.s32.totalorder 2, %s13
      // Predicated region
      $region49: #{tpu_custom_call.1} parent=5 // pred_check
        %p485 = pneg %p484
      $region50: #{tpu_custom_call.1} parent=5 // pred_check_branch
        %487 = sbr.rel (%p485) target = $region52
      $region51: #{tpu_custom_call.1} parent=5 // pred_region
        %s488 = ssub.s32 %s13, 2
        // Predicated region
        $region53: #{tpu_custom_call.1} parent=51 // pred_check
          %p489 = pneg %p167
        $region54: #{tpu_custom_call.1} parent=51 // pred_check_branch
          %491 = sbr.rel (%p489) target = $region56
        $region55: #{tpu_custom_call.1} parent=51 // pred_region
          %s492 = sand.u32 %s152, 1
          %s493 = scalar_lea.sflag [#allocation4], %s492
          %s494 = sand.u32 %s152, 1
          %s495 = smul.addr %s494, 32
          %s496 = scalar_lea.vmem [#allocation3], %s495
          %498 = dma.done %s493, 512
        $region56: #{tpu_custom_call.1} parent=51 // pred_fallthru
          _
      $region52: #{tpu_custom_call.1} parent=5 // pred_fallthru
        _
    $region6: #{tpu_custom_call.1} parent=1 // loop_footer
      %s17 = sadd.s32 1, %s13
    $region7: #{tpu_custom_call.1} parent=1 // loop_footer_branch
      %12 = sbr.rel target = $region3
    $region8: #{tpu_custom_call.1} parent=1 // loop_exit
      _
    %499 = vsyncpa [#allocation4], 1
    %s500 = scalar_lea.sflag [#allocation4], 1
    %501 = vsyncpa %s500, 1

</llo_original>
